<compile_context>
chip_gen: v7x
topology: tpu7x:2x2x1
jax: 0.10.0
libtpu: 0.0.40
codegen_flags: <defaults>
</compile_context>

<pallas_src>
import functools

import jax
import jax.numpy as jnp
from jax import lax
from jax.experimental import pallas as pl
from jax.experimental.pallas import tpu as pltpu

DEFAULT_GAMMA = 2.0

# ~2 MiB per predict block; 2x double-buffered stays far below the smallest
# scoped-VMEM default (16 MiB on v5e) and leaves ample headroom on v7x (64 MiB
# physical).  No vmem_limit_bytes raise needed.
_TARGET_BLOCK_BYTES = 2 * 1024 * 1024
_MAX_DOUBLE_BUFFERED_BYTES = 12 * 1024 * 1024


def _round_up(x, m):
    return ((x + m - 1) // m) * m


def _round_down(x, m):
    return (x // m) * m


# --------------------------------------------------------------------------
# Kernel 1: row-major layout (rows on sublanes).  Used for larger C, where the
# kernel is HBM-bound and lanes are already dense.
# --------------------------------------------------------------------------
def _focal_rowmajor_kernel(pred_ref, tgt_ref, alpha_ref, out_ref, *,
                           total_n, tile_n, gamma, partial_sum):
    i = pl.program_id(0)

    x = pred_ref[...].astype(jnp.float32)    # (tn, C) logits, upcast in-kernel
    t = tgt_ref[...]                         # (tn, 1) int32 labels
    a = alpha_ref[...]                       # (tn, 1) f32 per-row alpha (wrapper gather)
    tn, c = x.shape

    # log-sum-exp over classes (no full softmax divide, no log(0)).
    m = jnp.max(x, axis=1, keepdims=True)
    lse = m + jnp.log(jnp.sum(jnp.exp(x - m), axis=1, keepdims=True))

    # Target logit via where-based gather (no materialized f32 one-hot).
    ids = lax.broadcasted_iota(jnp.int32, (tn, c), 1)
    x_t = jnp.sum(jnp.where(ids == t, x, 0.0), axis=1, keepdims=True)

    log_p = x_t - lse
    probs = jnp.exp(log_p)
    d = jnp.maximum(1.0 - probs, 0.0)        # clamp: fp roundoff can give tiny negatives
    if float(gamma) == 2.0:
        focal = d * d                        # 1 VPU mul, keeps EUP slot free
    else:
        focal = jnp.power(d, jnp.float32(gamma))
    loss = -a * focal * log_p                # (tn, 1)

    if partial_sum:
        # Padded tail rows hold garbage -> must be excluded before summing.
        row = lax.broadcasted_iota(jnp.int32, (tn, 1), 0) + i * tile_n
        loss = jnp.where(row < total_n, loss, 0.0)
        tile_sum = jnp.sum(loss, axis=0, keepdims=True)          # (1, 1)
        out_ref[...] = jnp.broadcast_to(tile_sum, (1, 128))      # lane-dense slab
    else:
        # Per-row output; Pallas clips the OOB rows of the partial last block.
        out_ref[...] = loss


# --------------------------------------------------------------------------
# Kernel 2: transposed layout (rows on lanes).  Used for small C, where the
# row-major layout would waste 1 - C/128 of every vreg and turn VPU-bound.
# --------------------------------------------------------------------------
def _focal_transposed_kernel(pred_ref, tgt_ref, alpha_ref, out_ref, *,
                             total_n, tile_n, gamma, partial_sum):
    i = pl.program_id(0)

    x = pred_ref[...].astype(jnp.float32)    # (C, tn)
    t = tgt_ref[...]                         # (1, tn) int32
    a = alpha_ref[...]                       # (1, tn) f32
    c, tn = x.shape

    m = jnp.max(x, axis=0, keepdims=True)                               # (1, tn)
    lse = m + jnp.log(jnp.sum(jnp.exp(x - m), axis=0, keepdims=True))   # (1, tn)

    ids = lax.broadcasted_iota(jnp.int32, (c, tn), 0)
    x_t = jnp.sum(jnp.where(ids == t, x, 0.0), axis=0, keepdims=True)   # (1, tn)

    log_p = x_t - lse
    probs = jnp.exp(log_p)
    d = jnp.maximum(1.0 - probs, 0.0)
    if float(gamma) == 2.0:
        focal = d * d
    else:
        focal = jnp.power(d, jnp.float32(gamma))
    loss = -a * focal * log_p                # (1, tn), lane-dense

    # Mask padded columns (needed for the partial sum; harmless for 'none').
    col = lax.broadcasted_iota(jnp.int32, (1, tn), 1) + i * tile_n
    loss = jnp.where(col < total_n, loss, 0.0)

    if partial_sum:
        tile_sum = jnp.sum(loss, axis=1, keepdims=True)          # (1, 1)
        out_ref[...] = jnp.broadcast_to(tile_sum, (1, 128))
    else:
        out_ref[...] = loss                  # lane-dense 'none' output


# --------------------------------------------------------------------------
# Tile sizing
# --------------------------------------------------------------------------
def _pick_tile_rows(n, c, itemsize):
    """Row-major: rows on sublanes, tn multiple of 8, block ~_TARGET_BLOCK_BYTES."""
    c_pad = max(128, _round_up(c, 128))                   # lanes pad to 128
    tn = _TARGET_BLOCK_BYTES // (c_pad * itemsize)
    tn = max(8, _round_down(tn, 8))
    while 2 * tn * c_pad * itemsize > _MAX_DOUBLE_BUFFERED_BYTES and tn > 8:
        tn = max(8, _round_down(tn // 2, 8))
    if tn >= n:
        tn = n                                            # single exact block
        if n > 16:                                        # >=2 tiles: feed both v7x TCs
            tn = _round_up(pl.cdiv(n, 2), 8)
    return tn


def _pick_tile_cols(n, c, itemsize):
    """Transposed: rows on lanes, tn multiple of 128, block ~_TARGET_BLOCK_BYTES."""
    c_rows = max(8, _round_up(c, 8))                      # sublanes pad to 8
    tn = _TARGET_BLOCK_BYTES // (c_rows * itemsize)
    tn = max(128, _round_down(tn, 128))
    while 2 * c_rows * tn * itemsize > _MAX_DOUBLE_BUFFERED_BYTES and tn > 128:
        tn = max(128, _round_down(tn // 2, 128))
    if tn >= n:
        tn = n                                            # single exact block
        if n > 256:                                       # >=2 tiles: feed both v7x TCs
            tn = _round_up(pl.cdiv(n, 2), 128)
    return tn


# --------------------------------------------------------------------------
# Wrapper
# --------------------------------------------------------------------------
def focal_loss(predict, target, alpha, gamma=DEFAULT_GAMMA, reduction="mean"):
    """predict: (N, C) float (any dtype), target: (N,) int, alpha: (C,) or (C,1).

    Matches FocalLoss.forward: loss_i = -alpha[t_i] * (1 - p_i)^gamma * log(p_i),
    reduced per `reduction` ('mean' | 'sum' | 'none').
    """
    n, c = predict.shape
    target = target.astype(jnp.int32)
    alpha = jnp.asarray(alpha).reshape(-1).astype(jnp.float32)
    alpha_rows = alpha[target]                            # per-row gather in the wrapper
    itemsize = jnp.dtype(predict.dtype).itemsize
    partial_sum = reduction in ("mean", "sum")

    # Small-C regime: put rows on lanes so vregs are fully utilized.
    use_transposed = c <= 32

    if use_transposed:
        tn = _pick_tile_cols(n, c, itemsize)
        num_tiles = pl.cdiv(n, tn)
        kernel = functools.partial(_focal_transposed_kernel, total_n=n,
                                   tile_n=tn, gamma=gamma, partial_sum=partial_sum)
        args = (predict.T, target.reshape(1, n), alpha_rows.reshape(1, n))
        in_specs = [
            pl.BlockSpec((c, tn), lambda i: (0, i)),      # logits (C, tn)
            pl.BlockSpec((1, tn), lambda i: (0, i)),      # labels
            pl.BlockSpec((1, tn), lambda i: (0, i)),      # per-row alpha
        ]
        if partial_sum:
            out_shape = jax.ShapeDtypeStruct((num_tiles, 128), jnp.float32)
            out_specs = pl.BlockSpec((1, 128), lambda i: (i, 0))
        else:
            out_shape = jax.ShapeDtypeStruct((1, n), jnp.float32)
            out_specs = pl.BlockSpec((1, tn), lambda i: (0, i))
    else:
        tn = _pick_tile_rows(n, c, itemsize)
        num_tiles = pl.cdiv(n, tn)
        kernel = functools.partial(_focal_rowmajor_kernel, total_n=n,
                                   tile_n=tn, gamma=gamma, partial_sum=partial_sum)
        args = (predict, target.reshape(n, 1), alpha_rows.reshape(n, 1))
        in_specs = [
            pl.BlockSpec((tn, c), lambda i: (i, 0)),      # logits (tn, C)
            pl.BlockSpec((tn, 1), lambda i: (i, 0)),      # labels
            pl.BlockSpec((tn, 1), lambda i: (i, 0)),      # per-row alpha
        ]
        if partial_sum:
            out_shape = jax.ShapeDtypeStruct((num_tiles, 128), jnp.float32)
            out_specs = pl.BlockSpec((1, 128), lambda i: (i, 0))
        else:
            # 'none' keeps the (N, 1) per-row layout; output traffic is <= 1/C
            # of the logit read here (C > 32), so the narrow store is not binding.
            out_shape = jax.ShapeDtypeStruct((n, 1), jnp.float32)
            out_specs = pl.BlockSpec((tn, 1), lambda i: (i, 0))

    out = pl.pallas_call(
        kernel,
        out_shape=out_shape,
        grid=(num_tiles,),
        in_specs=in_specs,
        out_specs=out_specs,
        compiler_params=pltpu.CompilerParams(
            dimension_semantics=("parallel",),            # v7x: tiles shard across both TCs
        ),
    )(*args)

    if partial_sum:
        total = jnp.sum(out[:, 0])                        # tiny: one f32 per tile
        if reduction == "mean":
            return total / jnp.float32(n)
        return total
    if use_transposed:
        return out.reshape(n, 1)
    return out


# --------------------------------------------------------------------------
# Pure-JAX reference mirroring the PyTorch forward.
# --------------------------------------------------------------------------
def focal_loss_ref(predict, target, alpha, gamma=DEFAULT_GAMMA, reduction="mean"):
    pt = jax.nn.softmax(predict.astype(jnp.float32), axis=1)
    c = predict.shape[1]
    class_mask = jax.nn.one_hot(target, c, dtype=jnp.float32)
    a = jnp.asarray(alpha).reshape(-1)[target].reshape(-1, 1)
    probs = jnp.sum(pt * class_mask, axis=1, keepdims=True)
    log_p = jnp.log(probs)
    loss = -a * jnp.power(1.0 - probs, gamma) * log_p
    if reduction == "mean":
        return jnp.mean(loss)
    if reduction == "sum":
        return jnp.sum(loss)
    return loss


if __name__ == "__main__":
    key = jax.random.PRNGKey(0)
    k1, k2, k3, k4, k5 = jax.random.split(key, 5)

    # Case 1: module defaults (class_num=8, alpha=None -> ones), small N.
    # Exercises the transposed small-C path (lane-dense rows), all reductions.
    N1, C1 = 20, 8
    pred1 = jax.random.normal(k1, (N1, C1), dtype=jnp.float32)
    tgt1 = jax.random.randint(k2, (N1,), 0, C1, dtype=jnp.int32)
    alpha1 = jnp.ones((C1, 1), dtype=jnp.float32)
    for red in ("mean", "sum", "none"):
        out = jax.block_until_ready(focal_loss(pred1, tgt1, alpha1, reduction=red))
        ref = focal_loss_ref(pred1, tgt1, alpha1, reduction=red)
        assert jnp.allclose(out, ref, atol=1e-5, rtol=1e-5), (red, out, ref)

    # Case 2: larger class count -> row-major path, 2 tiles with a masked tail.
    N2, C2 = 300, 256
    pred2 = jax.random.normal(k3, (N2, C2), dtype=jnp.float32)
    tgt2 = jax.random.randint(k4, (N2,), 0, C2, dtype=jnp.int32)
    alpha2 = jax.random.uniform(k5, (C2,), minval=0.5, maxval=1.5, dtype=jnp.float32)
    for red in ("mean", "none"):
        out = jax.block_until_ready(focal_loss(pred2, tgt2, alpha2, reduction=red))
        ref = focal_loss_ref(pred2, tgt2, alpha2, reduction=red)
        assert jnp.allclose(out, ref, atol=1e-4, rtol=1e-4), (red, out, ref)

    print("KERNEL_OK")
</pallas_src>

<mosaic_0001>
module attributes {stable_mosaic.version = 11 : i64} {
  func.func @_focal_transposed_kernel(%arg0: i32, %arg1: memref<8x20xf32, #tpu.memory_space<vmem>>, %arg2: memref<1x20xi32, #tpu.memory_space<vmem>>, %arg3: memref<1x20xf32, #tpu.memory_space<vmem>>, %arg4: memref<1x128xf32, #tpu.memory_space<vmem>>) attributes {dimension_semantics = [#tpu.dimension_semantics<parallel>], iteration_bounds = array<i64: 1>, scalar_prefetch = 0 : i64, scratch_operands = 0 : i64, tpu.core_type = #tpu.core_type<tc>, window_params = [{transform_indices = @transform_0, window_bounds = array<i64: 8, 20>}, {transform_indices = @transform_1, window_bounds = array<i64: 1, 20>}, {transform_indices = @transform_2, window_bounds = array<i64: 1, 20>}, {transform_indices = @transform_3, window_bounds = array<i64: 1, 128>}]} {
    %c0 = arith.constant 0 : index
    %c0_0 = arith.constant 0 : index
    %0 = vector.load %arg1[%c0, %c0_0] : memref<8x20xf32, #tpu.memory_space<vmem>>, vector<8x20xf32>
    %c0_1 = arith.constant 0 : index
    %c0_2 = arith.constant 0 : index
    %1 = vector.load %arg2[%c0_1, %c0_2] : memref<1x20xi32, #tpu.memory_space<vmem>>, vector<1x20xi32>
    %c0_3 = arith.constant 0 : index
    %c0_4 = arith.constant 0 : index
    %2 = vector.load %arg3[%c0_3, %c0_4] : memref<1x20xf32, #tpu.memory_space<vmem>>, vector<1x20xf32>
    %cst = arith.constant dense<0xFF800000> : vector<20xf32>
    %3 = vector.multi_reduction <maximumf>, %0, %cst [0] : vector<8x20xf32> to vector<20xf32>
    %4 = vector.shape_cast %3 : vector<20xf32> to vector<1x20xf32>
    %5 = vector.broadcast %4 : vector<1x20xf32> to vector<8x20xf32>
    %6 = arith.subf %0, %5 : vector<8x20xf32>
    %7 = math.exp %6 : vector<8x20xf32>
    %cst_5 = arith.constant dense<0.000000e+00> : vector<20xf32>
    %8 = vector.multi_reduction <add>, %7, %cst_5 [0] : vector<8x20xf32> to vector<20xf32>
    %9 = vector.shape_cast %8 : vector<20xf32> to vector<1x20xf32>
    %10 = math.log %9 : vector<1x20xf32>
    %11 = arith.addf %4, %10 : vector<1x20xf32>
    %12 = tpu.iota {dimensions = array<i32: 0>} : vector<8x20xi32>
    %13 = vector.broadcast %1 : vector<1x20xi32> to vector<8x20xi32>
    %14 = arith.cmpi eq, %12, %13 : vector<8x20xi32>
    %cst_6 = arith.constant 0.000000e+00 : f32
    %15 = vector.broadcast %cst_6 : f32 to vector<8x20xf32>
    %16 = arith.select %14, %0, %15 : vector<8x20xi1>, vector<8x20xf32>
    %cst_7 = arith.constant dense<0.000000e+00> : vector<20xf32>
    %17 = vector.multi_reduction <add>, %16, %cst_7 [0] : vector<8x20xf32> to vector<20xf32>
    %18 = vector.shape_cast %17 : vector<20xf32> to vector<1x20xf32>
    %19 = arith.subf %18, %11 : vector<1x20xf32>
    %20 = math.exp %19 : vector<1x20xf32>
    %cst_8 = arith.constant 1.000000e+00 : f32
    %21 = vector.broadcast %cst_8 : f32 to vector<1x20xf32>
    %22 = arith.subf %21, %20 : vector<1x20xf32>
    %cst_9 = arith.constant 0.000000e+00 : f32
    %23 = vector.broadcast %cst_9 : f32 to vector<1x20xf32>
    %24 = arith.maximumf %22, %23 : vector<1x20xf32>
    %25 = arith.mulf %24, %24 : vector<1x20xf32>
    %cst_10 = arith.constant 0.000000e+00 : f32
    %26 = vector.broadcast %cst_10 : f32 to vector<1x20xf32>
    %27 = arith.subf %26, %2 : vector<1x20xf32>
    %28 = arith.mulf %27, %25 : vector<1x20xf32>
    %29 = arith.mulf %28, %19 : vector<1x20xf32>
    %30 = tpu.iota {dimensions = array<i32: 1>} : vector<1x20xi32>
    %c20_i32 = arith.constant 20 : i32
    %31 = arith.muli %arg0, %c20_i32 : i32
    %32 = vector.broadcast %31 : i32 to vector<1x20xi32>
    %33 = arith.addi %30, %32 : vector<1x20xi32>
    %c20_i32_11 = arith.constant 20 : i32
    %34 = vector.broadcast %c20_i32_11 : i32 to vector<1x20xi32>
    %35 = arith.cmpi slt, %33, %34 : vector<1x20xi32>
    %cst_12 = arith.constant 0.000000e+00 : f32
    %36 = vector.broadcast %cst_12 : f32 to vector<1x20xf32>
    %37 = arith.select %35, %29, %36 : vector<1x20xi1>, vector<1x20xf32>
    %cst_13 = arith.constant dense<0.000000e+00> : vector<1xf32>
    %38 = vector.multi_reduction <add>, %37, %cst_13 [1] : vector<1x20xf32> to vector<1xf32>
    %39 = vector.shape_cast %38 : vector<1xf32> to vector<1x1xf32>
    %40 = vector.shape_cast %39 : vector<1x1xf32> to vector<1x1xf32>
    %41 = vector.broadcast %40 : vector<1x1xf32> to vector<1x128xf32>
    %c0_14 = arith.constant 0 : index
    %c0_15 = arith.constant 0 : index
    %42 = vector.load %arg4[%c0_14, %c0_15] : memref<1x128xf32, #tpu.memory_space<vmem>>, vector<1x128xf32>
    tpu.vector_store %arg4[%c0_14, %c0_15], %41 {strides = array<i32>} : memref<1x128xf32, #tpu.memory_space<vmem>>, vector<1x128xf32>,
    return
  }
  func.func @transform_0(%arg0: i32) -> (i32, i32) {
    %c0_i32 = arith.constant 0 : i32
    %c0_i32_0 = arith.constant 0 : i32
    return %c0_i32, %arg0 : i32, i32
  }
  func.func @transform_1(%arg0: i32) -> (i32, i32) {
    %c0_i32 = arith.constant 0 : i32
    %c0_i32_0 = arith.constant 0 : i32
    return %c0_i32, %arg0 : i32, i32
  }
  func.func @transform_2(%arg0: i32) -> (i32, i32) {
    %c0_i32 = arith.constant 0 : i32
    %c0_i32_0 = arith.constant 0 : i32
    return %c0_i32, %arg0 : i32, i32
  }
  func.func @transform_3(%arg0: i32) -> (i32, i32) {
    %c0_i32 = arith.constant 0 : i32
    %c0_i32_0 = arith.constant 0 : i32
    return %arg0, %c0_i32 : i32, i32
  }
}

</mosaic_0001>

<llo_original>
// kernel: tpu_custom_call.1
$region0: #{tpu_custom_call.1}
  #allocation0 [shape = 'u32[]', space=smem, size = 0x4, offset = 0x4, fixed_abs, tag = 'smem constant byte address 0x4 - core index']
  #allocation1 [shape = 'u32[144,128]{1,0:T(1,128)}', space=vmem, size = 0x12000, scoped, tag = 'internal scratch']
  %s0 = inlined_call_operand.hbm [shape: f32[8,20], index: 0, kind: input, shape index: {}]
  %s1 = inlined_call_operand.vmem [shape: s32[1,20], index: 1, kind: input, shape index: {}]
  %s2 = inlined_call_operand.vmem [shape: f32[1,20], index: 2, kind: input, shape index: {}]
  %s3 = inlined_call_operand.hbm [shape: f32[1,128], index: 3, kind: output, shape index: {}]
  %s4 = sld [smem:[#allocation0]]
  $region26: #{tpu_custom_call.1} parent=0
    _
  %s6 = ssub.s32 1, %s4
  %s7 = scalar_select 0, %s6, %s4
  $region1: #{tpu_custom_call.1} parent=0
    #allocation2 [shape = 'u8[4096]{0}', space=vmem, size = 0x1000, scoped, tag = 'input window, operand 0, single buffered']
    #allocation3 [shape = 's32[1]{0}', space=sflag, size = 0x4, scoped, tag = 'scoped memory for tpu_custom_call.1']
    #allocation4 [shape = 's32[1]{0}', space=sflag, size = 0x4, scoped, tag = 'scoped memory for tpu_custom_call.1']
    #allocation5 [shape = 'u8[512]{0}', space=vmem, size = 0x400, scoped, tag = 'output window, operand 0, single buffered']
    %8 = vsyncpa [#allocation3], 0
    %9 = vsyncpa [#allocation4], 0
    // Predicated region
    $region2: #{tpu_custom_call.1} parent=1 // pred_check
      _
    $region3: #{tpu_custom_call.1} parent=1 // pred_check_branch
      %11 = sbr.rel (0) target = $region5
    $region4: #{tpu_custom_call.1} parent=1 // pred_region
      %s13 = ssub.s32 128, 128
      %14 = vsyncadd [#allocation3], %s13
      %s16 = sshll.u32 [#allocation2], 4
      %s17 = int_to_ptr.vmem [resolvable:$true] %s16
      %19 = dma.hbm_to_vmem [thread:$0]  %s0, 128, %s17, [#allocation3]
    $region5: #{tpu_custom_call.1} parent=1 // pred_fallthru
      _
    // Predicated region
    $region6: #{tpu_custom_call.1} parent=1 // pred_check
      _
    $region7: #{tpu_custom_call.1} parent=1 // pred_check_branch
      %21 = sbr.rel (0) target = $region9
    $region8: #{tpu_custom_call.1} parent=1 // pred_region
      _
    $region9: #{tpu_custom_call.1} parent=1 // pred_fallthru
      _
    // Predicated region
    $region10: #{tpu_custom_call.1} parent=1 // pred_check
      _
    $region11: #{tpu_custom_call.1} parent=1 // pred_check_branch
      %23 = sbr.rel (0) target = $region13
    $region12: #{tpu_custom_call.1} parent=1 // pred_region
      _
    $region13: #{tpu_custom_call.1} parent=1 // pred_fallthru
      _
    // Predicated region
    $region14: #{tpu_custom_call.1} parent=1 // pred_check
      _
    $region15: #{tpu_custom_call.1} parent=1 // pred_check_branch
      %25 = sbr.rel (0) target = $region17
    $region16: #{tpu_custom_call.1} parent=1 // pred_region
      %26 = dma.done [#allocation3], 128
    $region17: #{tpu_custom_call.1} parent=1 // pred_fallthru
      _
    %v27 = vld [vmem:[#allocation2] sm:$0xff]
    %v28 = vld [vmem:[%s1] sm:$0x1]
    %v29 = vld [vmem:[%s2] sm:$0x1]
    %vm30 = vcmask 162816
    %v31 = vsel %vm30, %v27, -inf
    %v32 = vrot.slane %v31, 4
    %v33 = vmax.f32 %v31, %v32
    %v34 = vrot.slane %v33, 2
    %v35 = vmax.f32 %v33, %v34
    %v36 = vrot.slane %v35, 1
    %v37 = vmax.f32 %v35, %v36
    %v38 = vsub.f32 %v27, %v37
    %v39 = vmul.f32 %v38, 1.442695
    %v40 = vpow.pop %v39
    %v41 = vsel %vm30, %v40, 0.0
    %v42 = vrot.slane %v41, 4
    %v43 = vadd.f32 %v41, %v42
    %v44 = vrot.slane %v43, 2
    %v45 = vadd.f32 %v43, %v44
    %v46 = vrot.slane %v45, 1
    %v47 = vadd.f32 %v45, %v46
    %v48 = vlog2.pop %v47
    %v49 = vmul.f32 %v48, 0.6931472
    %v50 = vadd.f32 %v37, %v49
    %v51 = vlaneseq
    %v52 = vshrl.u32 %v51, 7
    %v53 = vlaneseq
    %v54 = vshrl.u32 %v53, 7
    %v55 = vsub.s32 0, %v54
    %v56 = vrot.slane %v28, %v55
    %vm57 = vcmp.eq.s32.totalorder %v52, %v56
    %v58 = vsel %vm57, %v27, 0.0
    %v59 = vsel %vm30, %v58, 0.0
    %v60 = vrot.slane %v59, 4
    %v61 = vadd.f32 %v59, %v60
    %v62 = vrot.slane %v61, 2
    %v63 = vadd.f32 %v61, %v62
    %v64 = vrot.slane %v63, 1
    %v65 = vadd.f32 %v63, %v64
    %v66 = vsub.f32 %v65, %v50
    %v67 = vmul.f32 %v66, 1.442695
    %v68 = vpow.pop %v67
    %v69 = vsub.f32 1.0, %v68
    %v70 = vmax.f32 %v69, 0.0
    %v71 = vmul.f32 %v70, %v70
    %v72 = vsub.f32 0.0, %v29
    %v73 = vmul.f32 %v72, %v71
    %v74 = vmul.f32 %v73, %v66
    %v75 = vlaneseq
    %v76 = vand.u32 %v75, 127
    %s77 = smul.u32 0, 20
    %v78 = vstv %s77
    %v79 = vadd.s32 %v76, %v78
    %vm80 = vcmp.lt.s32.totalorder %v79, 20
    %v81 = vsel %vm80, %v74, 0.0
    %vm82 = vcmask 155648
    %v83 = vsel %vm82, %v81, 0.0
    %84 = vadd.xlane.f32.xlu0 %v83
    %v85 = vpop.xlane.xlu0 %84
    %86 = vst [vmem:[#allocation5] sm:$0x1] %v85
    // Predicated region
    $region18: #{tpu_custom_call.1} parent=1 // pred_check
      _
    $region19: #{tpu_custom_call.1} parent=1 // pred_check_branch
      %88 = sbr.rel (0) target = $region21
    $region20: #{tpu_custom_call.1} parent=1 // pred_region
      %s90 = ssub.s32 16, 16
      %91 = vsyncadd [#allocation4], %s90
      %s93 = sshll.u32 [#allocation5], 4
      %s94 = int_to_ptr.vmem [resolvable:$true] %s93
      %96 = dma.vmem_to_hbm [thread:$0]  %s94, 16, %s3, [#allocation4]
    $region21: #{tpu_custom_call.1} parent=1 // pred_fallthru
      _
    // Predicated region
    $region22: #{tpu_custom_call.1} parent=1 // pred_check
      _
    $region23: #{tpu_custom_call.1} parent=1 // pred_check_branch
      %98 = sbr.rel (0) target = $region25
    $region24: #{tpu_custom_call.1} parent=1 // pred_region
      %99 = dma.done [#allocation4], 16
    $region25: #{tpu_custom_call.1} parent=1 // pred_fallthru
      _
    %100 = vsyncpa [#allocation3], 1
    %101 = vsyncpa [#allocation4], 1

</llo_original>
